<compile_context>
chip_gen: v5e
topology: v5e:2x2
jax: 0.10.0
libtpu: 0.0.40
codegen_flags: <defaults>
</compile_context>

<pallas_src>
import jax
import jax.numpy as jnp
from jax.experimental import pallas as pl
from jax.experimental.pallas import tpu as pltpu


def se_attention_kernel(x_ref, w1t_ref, w2t_ref, o_ref):
    # x_ref: (TB, C, HW)   w1t_ref: (C, HIDDEN)   w2t_ref: (HIDDEN, C)
    x = x_ref[...]                                            # input dtype, (TB, C, HW)

    # --- squeeze: global average pool over spatial positions (accumulate in f32) ---
    y = jnp.mean(x, axis=2, dtype=jnp.float32)                # (TB, C)

    # --- excitation: fc1 -> ReLU -> fc2 -> sigmoid (batched over TB rows) ---
    h = jnp.dot(y, w1t_ref[...], preferred_element_type=jnp.float32)   # (TB, HIDDEN)
    h = jnp.maximum(h, 0.0)
    s = jnp.dot(h, w2t_ref[...], preferred_element_type=jnp.float32)   # (TB, C)
    s = jax.nn.sigmoid(s)

    # --- scale: broadcast (TB, C, 1) over HW, multiply in the input dtype ---
    o_ref[...] = x * s[:, :, None].astype(x.dtype)


def _pick_batch_tile(b, c, hw, itemsize, vmem_tile_budget_bytes=24 * 1024 * 1024):
    """Largest divisor of b whose double-buffered in+out tiles fit the budget,
    while keeping the grid length >= 2 when b >= 2 (v7x has 2 TensorCores)."""
    per_image = c * hw * itemsize
    # double-buffered input + output tiles => 4 copies of the tile live in VMEM
    max_tb = max(1, vmem_tile_budget_bytes // (4 * per_image))
    if b >= 2:
        max_tb = min(max_tb, (b + 1) // 2)
    tb = 1
    for d in range(1, b + 1):
        if b % d == 0 and d <= max_tb:
            tb = d
    return tb


def se_attention(x, w1, w2):
    """x: (b, c, H, W) NCHW.  w1: (c//r, c)  w2: (c, c//r)  (PyTorch Linear layout)."""
    b, c, H, W = x.shape
    hidden = w1.shape[0]
    hw = H * W
    x_flat = x.reshape(b, c, hw)

    # Pre-transpose weights so the kernel does (TB,C)@(C,Hid) and (TB,Hid)@(Hid,C).
    w1t = jnp.transpose(w1)                                   # (C, HIDDEN)
    w2t = jnp.transpose(w2)                                   # (HIDDEN, C)

    itemsize = jnp.dtype(x.dtype).itemsize
    tb = _pick_batch_tile(b, c, hw, itemsize)
    grid = b // tb

    tile_bytes = tb * c * hw * itemsize
    weight_bytes = (w1t.size + w2t.size) * 4
    # 2 tensors (in/out) x 2 buffers each + resident weights + headroom; keep < 64 MiB (v7x).
    vmem_limit = min(4 * tile_bytes + 2 * weight_bytes + (8 << 20), 48 << 20)

    out_flat = pl.pallas_call(
        se_attention_kernel,
        out_shape=jax.ShapeDtypeStruct((b, c, hw), x.dtype),
        grid_spec=pltpu.PrefetchScalarGridSpec(
            num_scalar_prefetch=0,
            grid=(grid,),
            in_specs=[
                pl.BlockSpec((tb, c, hw), lambda i: (i, 0, 0)),
                pl.BlockSpec((c, hidden), lambda i: (0, 0)),
                pl.BlockSpec((hidden, c), lambda i: (0, 0)),
            ],
            out_specs=pl.BlockSpec((tb, c, hw), lambda i: (i, 0, 0)),
        ),
        compiler_params=pltpu.CompilerParams(
            dimension_semantics=("parallel",),
            vmem_limit_bytes=int(vmem_limit),
        ),
    )(x_flat, w1t, w2t)

    return out_flat.reshape(b, c, H, W)


def se_attention_ref(x, w1, w2):
    """Pure-JAX reference matching the PyTorch module semantics."""
    y = jnp.mean(x, axis=(2, 3))                 # (b, c)  adaptive avg pool -> view
    y = jnp.maximum(y @ w1.T, 0.0)               # Linear(c, c//r, bias=False) + ReLU
    y = jax.nn.sigmoid(y @ w2.T)                 # Linear(c//r, c, bias=False) + Sigmoid
    return x * y[:, :, None, None]               # expand_as + elementwise multiply


if __name__ == "__main__":
    # Small, deterministic configuration consistent with SEAttention(channel, reduction)
    B, C, H, W = 2, 32, 16, 16
    REDUCTION = 4
    HIDDEN = C // REDUCTION

    key = jax.random.PRNGKey(0)
    kx, k1, k2 = jax.random.split(key, 3)

    x = jax.random.normal(kx, (B, C, H, W), dtype=jnp.float32)
    # Deterministic synthetic weights (PyTorch nn.Linear weight layout: (out, in))
    w1 = jax.random.normal(k1, (HIDDEN, C), dtype=jnp.float32) * 0.1
    w2 = jax.random.normal(k2, (C, HIDDEN), dtype=jnp.float32) * 0.1

    out = se_attention(x, w1, w2)
    out = jax.block_until_ready(out)

    ref = se_attention_ref(x, w1, w2)
    assert out.shape == (B, C, H, W)
    assert jnp.allclose(out, ref, atol=1e-5, rtol=1e-5), "mismatch vs reference"

    print("KERNEL_OK")
</pallas_src>

<mosaic_0001>
module attributes {stable_mosaic.version = 11 : i64} {
  func.func @se_attention_kernel(%arg0: i32, %arg1: memref<1x32x256xf32, #tpu.memory_space<vmem>>, %arg2: memref<32x8xf32, #tpu.memory_space<vmem>>, %arg3: memref<8x32xf32, #tpu.memory_space<vmem>>, %arg4: memref<1x32x256xf32, #tpu.memory_space<vmem>>) attributes {dimension_semantics = [#tpu.dimension_semantics<parallel>], iteration_bounds = array<i64: 2>, scalar_prefetch = 0 : i64, scratch_operands = 0 : i64, tpu.core_type = #tpu.core_type<tc>, window_params = [{transform_indices = @transform_0, window_bounds = array<i64: 1, 32, 256>}, {pipeline_mode = #tpu.pipeline_mode<synchronous>, transform_indices = @transform_1, window_bounds = array<i64: 32, 8>}, {pipeline_mode = #tpu.pipeline_mode<synchronous>, transform_indices = @transform_2, window_bounds = array<i64: 8, 32>}, {transform_indices = @transform_3, window_bounds = array<i64: 1, 32, 256>}]} {
    %c0 = arith.constant 0 : index
    %c0_0 = arith.constant 0 : index
    %c0_1 = arith.constant 0 : index
    %0 = vector.load %arg1[%c0, %c0_0, %c0_1] : memref<1x32x256xf32, #tpu.memory_space<vmem>>, vector<1x32x256xf32>
    %cst = arith.constant dense<0.000000e+00> : vector<1x32xf32>
    %1 = vector.multi_reduction <add>, %0, %cst [2] : vector<1x32x256xf32> to vector<1x32xf32>
    %cst_2 = arith.constant 2.560000e+02 : f32
    %2 = vector.broadcast %cst_2 : f32 to vector<1x32xf32>
    %3 = arith.divf %1, %2 : vector<1x32xf32>
    %c0_3 = arith.constant 0 : index
    %c0_4 = arith.constant 0 : index
    %4 = vector.load %arg2[%c0_3, %c0_4] : memref<32x8xf32, #tpu.memory_space<vmem>>, vector<32x8xf32>
    %cst_5 = arith.constant dense<0.000000e+00> : vector<1x8xf32>
    %5 = tpu.matmul %3, %4, %cst_5 {dimension_numbers = #tpu.dot_dimension_numbers<[1], [0], [0], [1], [0, 0, 1, 1], [], []>} : vector<1x32xf32>, vector<32x8xf32>, vector<1x8xf32> -> vector<1x8xf32>
    %cst_6 = arith.constant 0.000000e+00 : f32
    %6 = vector.broadcast %cst_6 : f32 to vector<1x8xf32>
    %7 = arith.maximumf %5, %6 : vector<1x8xf32>
    %c0_7 = arith.constant 0 : index
    %c0_8 = arith.constant 0 : index
    %8 = vector.load %arg3[%c0_7, %c0_8] : memref<8x32xf32, #tpu.memory_space<vmem>>, vector<8x32xf32>
    %cst_9 = arith.constant dense<0.000000e+00> : vector<1x32xf32>
    %9 = tpu.matmul %7, %8, %cst_9 {dimension_numbers = #tpu.dot_dimension_numbers<[1], [0], [0], [1], [0, 0, 1, 1], [], []>} : vector<1x8xf32>, vector<8x32xf32>, vector<1x32xf32> -> vector<1x32xf32>
    %10 = arith.negf %9 : vector<1x32xf32>
    %11 = math.exp %10 : vector<1x32xf32>
    %cst_10 = arith.constant 1.000000e+00 : f32
    %12 = vector.broadcast %cst_10 : f32 to vector<1x32xf32>
    %13 = arith.addf %12, %11 : vector<1x32xf32>
    %14 = arith.divf %12, %13 : vector<1x32xf32>
    %15 = vector.shape_cast %14 : vector<1x32xf32> to vector<1x32x1xf32>
    %16 = vector.broadcast %15 : vector<1x32x1xf32> to vector<1x32x256xf32>
    %17 = arith.mulf %0, %16 : vector<1x32x256xf32>
    %c0_11 = arith.constant 0 : index
    %c0_12 = arith.constant 0 : index
    %c0_13 = arith.constant 0 : index
    %18 = vector.load %arg4[%c0_11, %c0_12, %c0_13] : memref<1x32x256xf32, #tpu.memory_space<vmem>>, vector<1x32x256xf32>
    tpu.vector_store %arg4[%c0_11, %c0_12, %c0_13], %17 {strides = array<i32>} : memref<1x32x256xf32, #tpu.memory_space<vmem>>, vector<1x32x256xf32>,
    return
  }
  func.func @transform_0(%arg0: i32) -> (i32, i32, i32) {
    %c0_i32 = arith.constant 0 : i32
    %c0_i32_0 = arith.constant 0 : i32
    %c0_i32_1 = arith.constant 0 : i32
    return %arg0, %c0_i32, %c0_i32_0 : i32, i32, i32
  }
  func.func @transform_1(%arg0: i32) -> (i32, i32) {
    %c0_i32 = arith.constant 0 : i32
    %c0_i32_0 = arith.constant 0 : i32
    %c0_i32_1 = arith.constant 0 : i32
    return %c0_i32, %c0_i32_0 : i32, i32
  }
  func.func @transform_2(%arg0: i32) -> (i32, i32) {
    %c0_i32 = arith.constant 0 : i32
    %c0_i32_0 = arith.constant 0 : i32
    %c0_i32_1 = arith.constant 0 : i32
    return %c0_i32, %c0_i32_0 : i32, i32
  }
  func.func @transform_3(%arg0: i32) -> (i32, i32, i32) {
    %c0_i32 = arith.constant 0 : i32
    %c0_i32_0 = arith.constant 0 : i32
    %c0_i32_1 = arith.constant 0 : i32
    return %arg0, %c0_i32, %c0_i32_0 : i32, i32, i32
  }
}

</mosaic_0001>

<llo_original>
// kernel: tpu_custom_call.1
$region0: #{tpu_custom_call.1}
  #allocation0 [shape = 'u32[]', space=smem, size = 0x4, offset = 0x4, fixed_abs, tag = 'smem constant byte address 0x4 - core index']
  #allocation1 [shape = 'u32[72,128]{1,0:T(1,128)}', space=vmem, size = 0x9000, scoped, tag = 'internal scratch']
  %s0 = inlined_call_operand.hbm [shape: f32[2,32,256], index: 0, kind: input, shape index: {}]
  %s1 = inlined_call_operand.vmem [shape: f32[32,8], index: 1, kind: input, shape index: {}]
  %s2 = inlined_call_operand.vmem [shape: f32[8,32], index: 2, kind: input, shape index: {}]
  %s3 = inlined_call_operand.hbm [shape: f32[2,32,256], index: 3, kind: output, shape index: {}]
  %s4 = sld [smem:[#allocation0]]
  $region49: #{tpu_custom_call.1} parent=0
    _
  %s6 = ssub.s32 1, %s4
  %s7 = scalar_select 0, %s6, %s4
  $region1: #{tpu_custom_call.1} parent=0
    #allocation2 [shape = 'u8[65536]{0}', space=vmem, size = 0x10000, scoped, tag = 'input window, operand 0']
    #allocation3 [shape = 's32[2]{0}', space=sflag, size = 0x8, scoped, tag = 'scoped memory for tpu_custom_call.1']
    #allocation4 [shape = 's32[2]{0}', space=sflag, size = 0x8, scoped, tag = 'scoped memory for tpu_custom_call.1']
    #allocation5 [shape = 'u8[65536]{0}', space=vmem, size = 0x10000, scoped, tag = 'output window, operand 0']
    %8 = vsyncpa [#allocation3], 0
    %s9 = scalar_lea.sflag [#allocation3], 1
    %10 = vsyncpa %s9, 0
    %11 = vsyncpa [#allocation4], 0
    %s12 = scalar_lea.sflag [#allocation4], 1
    %13 = vsyncpa %s12, 0
    loop: start=0, step=1, limit=4
    $region2: #{tpu_custom_call.1} parent=1 // loop_pre_header
      _
    $region3: #{tpu_custom_call.1} parent=1 // loop_header
      %s15 = sphi 0, %s19
      %p16 = scmp.ge.s32.totalorder %s15, 4
      %s25 = sphi 0, %s27
      %s28 = sphi 0, %s25
      %s29 = sphi 0, %s28
      %s45 = sphi 0, %s29
      %s49 = sphi 0, %s49
      %s51 = sphi 0, %s49
      %s52 = sphi 0, %s51
      %s66 = sphi 0, %s52
      %s70 = sphi 0, %s70
      %s72 = sphi 0, %s70
      %s73 = sphi 0, %s72
      %s87 = sphi 0, %s73
      %s93 = sphi 0, %s95
      %s96 = sphi 0, %s93
      %s97 = sphi 0, %s96
      %s113 = sphi 0, %s97
    $region4: #{tpu_custom_call.1} parent=1 // loop_header_branch
      %18 = sbr.rel (%p16) target = $region8
    $region5: #{tpu_custom_call.1} parent=1 // loop_body
      %s20 = ssub.s32 %s15, 1
      %s21 = ssub.s32 %s15, 2
      %s22 = sadd.s32 %s15, 1
      %s23 = ssub.s32 %s15, %s22
      %p24 = scmp.eq.s32.totalorder %s23, 0
      %s26 = sadd.s32 %s25, 1
      %s27 = scalar_select %p24, %s25, %s26
      %p30 = pneg %p24
      %p31 = scmp.eq.s32.totalorder %s15, 1
      %p32 = por %p30, %p31
      %p33 = scmp.ne.s32.totalorder %s25, %s28
      %p34 = scmp.eq.s32.totalorder %s15, 0
      %p35 = por %p33, %p34
      %p36 = scmp.ne.s32.totalorder %s25, %s28
      %p37 = scmp.eq.s32.totalorder %s20, 1
      %p38 = por %p36, %p37
      %p39 = scmp.ne.s32.totalorder %s28, %s29
      %p40 = scmp.eq.s32.totalorder %s20, 0
      %p41 = por %p39, %p40
      %p42 = scmp.ne.s32.totalorder %s28, %s29
      %p43 = scmp.eq.s32.totalorder %s21, 1
      %p44 = por %p42, %p43
      %p46 = scmp.ne.s32.totalorder %s29, %s45
      %p47 = scmp.eq.s32.totalorder %s21, 0
      %p48 = por %p46, %p47
      %s50 = sadd.s32 %s49, 1
      %p53 = scmp.eq.s32.totalorder %s15, 1
      %p54 = scmp.ne.s32.totalorder %s49, %s51
      %p55 = scmp.eq.s32.totalorder %s15, 0
      %p56 = por %p54, %p55
      %p57 = scmp.ne.s32.totalorder %s49, %s51
      %p58 = scmp.eq.s32.totalorder %s20, 1
      %p59 = por %p57, %p58
      %p60 = scmp.ne.s32.totalorder %s51, %s52
      %p61 = scmp.eq.s32.totalorder %s20, 0
      %p62 = por %p60, %p61
      %p63 = scmp.ne.s32.totalorder %s51, %s52
      %p64 = scmp.eq.s32.totalorder %s21, 1
      %p65 = por %p63, %p64
      %p67 = scmp.ne.s32.totalorder %s52, %s66
      %p68 = scmp.eq.s32.totalorder %s21, 0
      %p69 = por %p67, %p68
      %s71 = sadd.s32 %s70, 1
      %p74 = scmp.eq.s32.totalorder %s15, 1
      %p75 = scmp.ne.s32.totalorder %s70, %s72
      %p76 = scmp.eq.s32.totalorder %s15, 0
      %p77 = por %p75, %p76
      %p78 = scmp.ne.s32.totalorder %s70, %s72
      %p79 = scmp.eq.s32.totalorder %s20, 1
      %p80 = por %p78, %p79
      %p81 = scmp.ne.s32.totalorder %s72, %s73
      %p82 = scmp.eq.s32.totalorder %s20, 0
      %p83 = por %p81, %p82
      %p84 = scmp.ne.s32.totalorder %s72, %s73
      %p85 = scmp.eq.s32.totalorder %s21, 1
      %p86 = por %p84, %p85
      %p88 = scmp.ne.s32.totalorder %s73, %s87
      %p89 = scmp.eq.s32.totalorder %s21, 0
      %p90 = por %p88, %p89
      %s91 = ssub.s32 %s15, %s22
      %p92 = scmp.eq.s32.totalorder %s91, 0
      %s94 = sadd.s32 %s93, 1
      %s95 = scalar_select %p92, %s93, %s94
      %p98 = pneg %p92
      %p99 = scmp.eq.s32.totalorder %s15, 1
      %p100 = por %p98, %p99
      %p101 = scmp.ne.s32.totalorder %s93, %s96
      %p102 = scmp.eq.s32.totalorder %s15, 0
      %p103 = por %p101, %p102
      %p104 = scmp.ne.s32.totalorder %s93, %s96
      %p105 = scmp.eq.s32.totalorder %s20, 1
      %p106 = por %p104, %p105
      %p107 = scmp.ne.s32.totalorder %s96, %s97
      %p108 = scmp.eq.s32.totalorder %s20, 0
      %p109 = por %p107, %p108
      %p110 = scmp.ne.s32.totalorder %s96, %s97
      %p111 = scmp.eq.s32.totalorder %s21, 1
      %p112 = por %p110, %p111
      %p114 = scmp.ne.s32.totalorder %s97, %s113
      %p115 = scmp.eq.s32.totalorder %s21, 0
      %p116 = por %p114, %p115
      %p117 = scmp.le.s32.totalorder 1, %s15
      %p118 = scmp.lt.s32.totalorder %s15, 3
      %p119 = pnand %p117, %p118
      %p120 = pneg %p119
      // Predicated region
      $region9: #{tpu_custom_call.1} parent=5 // pred_check
        _
      $region10: #{tpu_custom_call.1} parent=5 // pred_check_branch
        %122 = sbr.rel (%p119) target = $region12
      $region11: #{tpu_custom_call.1} parent=5 // pred_region
        %s123 = ssub.s32 %s15, 1
        // Predicated region
        $region13: #{tpu_custom_call.1} parent=11 // pred_check
          %p124 = pneg %p62
        $region14: #{tpu_custom_call.1} parent=11 // pred_check_branch
          %126 = sbr.rel (%p124) target = $region16
        $region15: #{tpu_custom_call.1} parent=11 // pred_region
          _
        $region16: #{tpu_custom_call.1} parent=11 // pred_fallthru
          _
        // Predicated region
        $region17: #{tpu_custom_call.1} parent=11 // pred_check
          %p127 = pneg %p83
        $region18: #{tpu_custom_call.1} parent=11 // pred_check_branch
          %129 = sbr.rel (%p127) target = $region20
        $region19: #{tpu_custom_call.1} parent=11 // pred_region
          _
        $region20: #{tpu_custom_call.1} parent=11 // pred_fallthru
          _
      $region12: #{tpu_custom_call.1} parent=5 // pred_fallthru
        _
      %p130 = scmp.lt.s32.totalorder %s15, 2
      // Predicated region
      $region21: #{tpu_custom_call.1} parent=5 // pred_check
        %p131 = pneg %p130
      $region22: #{tpu_custom_call.1} parent=5 // pred_check_branch
        %133 = sbr.rel (%p131) target = $region24
      $region23: #{tpu_custom_call.1} parent=5 // pred_region
        // Predicated region
        $region25: #{tpu_custom_call.1} parent=23 // pred_check
          %p134 = pneg %p35
        $region26: #{tpu_custom_call.1} parent=23 // pred_check_branch
          %136 = sbr.rel (%p134) target = $region28
        $region27: #{tpu_custom_call.1} parent=23 // pred_region
          %s137 = sand.u32 %s25, 1
          %s138 = scalar_lea.sflag [#allocation3], %s137
          %s139 = sand.u32 %s25, 1
          %s140 = smul.addr %s139, 64
          %s141 = scalar_lea.vmem [#allocation2], %s140
          %143 = vsyncadd %s138, 0
          %s144 = smul.addr %s15, 8
          %s145 = smul.addr %s144, 8
          %s146 = scalar_lea.hbm %s0, %s145
          %s147 = sshll.u32 %s146, 4
          %s148 = int_to_ptr.hbm [resolvable:$true] %s147
          %s149 = sshll.u32 %s141, 4
          %s150 = int_to_ptr.vmem [resolvable:$true] %s149
          %155 = dma.hbm_to_vmem [thread:$0]  %s148, 1024, %s150, %s138, 256, 256, 16
        $region28: #{tpu_custom_call.1} parent=23 // pred_fallthru
          _
      $region24: #{tpu_custom_call.1} parent=5 // pred_fallthru
        _
      %p156 = scmp.le.s32.totalorder 1, %s15
      %p157 = scmp.lt.s32.totalorder %s15, 3
      %p158 = pnand %p156, %p157
      %p159 = pneg %p158
      // Predicated region
      $region29: #{tpu_custom_call.1} parent=5 // pred_check
        _
      $region30: #{tpu_custom_call.1} parent=5 // pred_check_branch
        %161 = sbr.rel (%p158) target = $region32
      $region31: #{tpu_custom_call.1} parent=5 // pred_region
        %s162 = ssub.s32 %s15, 1
        %s163 = sand.u32 %s28, 1
        %s164 = scalar_lea.sflag [#allocation3], %s163
        %s165 = sand.u32 %s28, 1
        %s166 = smul.addr %s165, 64
        %s167 = scalar_lea.vmem [#allocation2], %s166
        // Predicated region
        $region33: #{tpu_custom_call.1} parent=31 // pred_check
          %p168 = pneg %p41
        $region34: #{tpu_custom_call.1} parent=31 // pred_check_branch
          %170 = sbr.rel (%p168) target = $region36
        $region35: #{tpu_custom_call.1} parent=31 // pred_region
          %172 = dma.done %s164, 1024
        $region36: #{tpu_custom_call.1} parent=31 // pred_fallthru
          _
        %s173 = sand.u32 %s28, 1
        %s174 = scalar_lea.sflag [#allocation3], %s173
        %s175 = sand.u32 %s28, 1
        %s176 = smul.addr %s175, 64
        %s177 = scalar_lea.vmem [#allocation2], %s176
        %p178 = pneg %p41
        %p179 = pneg %p38
        %p180 = pneg %p62
        %p181 = pneg %p59
        %p182 = pneg %p83
        %p183 = pneg %p80
        %p184 = pneg %p109
        %p185 = pneg %p106
        %s186 = sand.u32 %s96, 1
        %s187 = scalar_lea.sflag [#allocation4], %s186
        %s188 = sand.u32 %s96, 1
        %s189 = smul.addr %s188, 64
        %s190 = scalar_lea.vmem [#allocation5], %s189
        %v191 = vld [vmem:[%s167] sm:$0xff]
        %v192 = vld [vmem:[%s167 + $0x8] sm:$0xff]
        %v193 = vld [vmem:[%s167 + $0x10] sm:$0xff]
        %v194 = vld [vmem:[%s167 + $0x18] sm:$0xff]
        %v195 = vld [vmem:[%s167 + $0x20] sm:$0xff]
        %v196 = vld [vmem:[%s167 + $0x28] sm:$0xff]
        %v197 = vld [vmem:[%s167 + $0x30] sm:$0xff]
        %v198 = vld [vmem:[%s167 + $0x38] sm:$0xff]
        %v199 = vadd.f32 %v191, %v192
        %200 = vadd.xlane.f32.xlu0 %v199
        %v201 = vpop.xlane.xlu0 %200
        %v202 = vadd.f32 %v193, %v194
        %203 = vadd.xlane.f32.xlu0 %v202
        %v204 = vpop.xlane.xlu0 %203
        %v205 = vadd.f32 %v195, %v196
        %206 = vadd.xlane.f32.xlu0 %v205
        %v207 = vpop.xlane.xlu0 %206
        %v208 = vadd.f32 %v197, %v198
        %209 = vadd.xlane.f32.xlu0 %v208
        %v210 = vpop.xlane.xlu0 %209
        %v211 = vrcp.pop 256.0
        %v212 = vmul.f32 256.0, %v211
        %v213 = vsub.f32 1.0, %v212
        %v214 = vmul.f32 %v211, %v213
        %v215 = vadd.f32 %v211, %v214
        %vm216 = vweird.f32 %v211
        %v217 = vsel %vm216, %v211, %v215
        %v218 = vmul.f32 %v201, %v217
        %v219 = vmul.f32 %v204, %v217
        %v220 = vmul.f32 %v207, %v217
        %v221 = vmul.f32 %v210, %v217
        %v222 = vld [vmem:[%s1] sm:$0xff]
        %v223 = vld [vmem:[%s1 + $0x8] sm:$0xff]
        %v224 = vld [vmem:[%s1 + $0x10] sm:$0xff]
        %v225 = vld [vmem:[%s1 + $0x18] sm:$0xff]
        %v230 = vlaneseq
        %v231 = vand.u32 %v230, 127
        %v232 = vperm.slane %v218, %v231
        %v233 = vadd.s32 %v231, 4294967288
        %v234 = vperm.slane %v219, %v233
        %vm235 = vcmask 130112
        %v236 = vsel %vm235, %v234, %v232
        %v237 = vadd.s32 %v231, 4294967280
        %v238 = vperm.slane %v220, %v237
        %vm239 = vcmask 195712
        %v240 = vsel %vm239, %v238, %v236
        %v241 = vadd.s32 %v231, 4294967272
        %v242 = vperm.slane %v221, %v241
        %vm243 = vcmask 261312
        %v244 = vsel %vm243, %v242, %v240
        %vm245 = vcmask 261120
        %v246 = vsel %vm245, %v244, 0
        %248 = vmatpush.msra.mxu0 0.0
        %249 = vmatpush.msra.mxu0 0.0
        %250 = vmatpush.msra.mxu0 0.0
        %251 = vmatpush.msra.mxu0 0.0
        %252 = vmatpush.msra.mxu0 0.0
        %253 = vmatpush.msra.mxu0 0.0
        %254 = vmatpush.msra.mxu0 0.0
        %255 = vmatpush.msra.mxu0 0.0
        %256 = vmatpush.msra.mxu0 0.0
        %257 = vmatpush.msra.mxu0 0.0
        %258 = vmatpush.msra.mxu0 0.0
        %259 = vmatpush.msra.mxu0 0.0
        %260 = vmatpush.msra.mxu0 %v225
        %261 = vmatpush.msra.mxu0 %v224
        %262 = vmatpush.msra.mxu0 %v223
        %263 = vmatpush.msra.mxu0 %v222
        %264 = vmatmul.f32.gmra.mxu0 %v246
        %v265 = vpop.f32.mrf.mxu0
        %v266 = vadd.f32 0.0, %v265
        %267 = vdwg.mxu0
        %v268 = vmax.f32 %v266, 0.0
        %v269 = vld [vmem:[%s2] sm:$0xff]
        %vm270 = vcmask 64512
        %v272 = vsel %vm270, %v268, 0
        %274 = vmatpush.msra.mxu0 0.0
        %275 = vmatpush.msra.mxu0 0.0
        %276 = vmatpush.msra.mxu0 0.0
        %277 = vmatpush.msra.mxu0 0.0
        %278 = vmatpush.msra.mxu0 0.0
        %279 = vmatpush.msra.mxu0 0.0
        %280 = vmatpush.msra.mxu0 0.0
        %281 = vmatpush.msra.mxu0 0.0
        %282 = vmatpush.msra.mxu0 0.0
        %283 = vmatpush.msra.mxu0 0.0
        %284 = vmatpush.msra.mxu0 0.0
        %285 = vmatpush.msra.mxu0 0.0
        %286 = vmatpush.msra.mxu0 0.0
        %287 = vmatpush.msra.mxu0 0.0
        %288 = vmatpush.msra.mxu0 0.0
        %289 = vmatpush.msra.mxu0 %v269
        %290 = vmatmul.f32.gmra.mxu0 %v272
        %v291 = vpop.f32.mrf.mxu0
        %v292 = vadd.f32 0.0, %v291
        %293 = vdwg.mxu0
        %v294 = vxor.u32 %v292, 2147483648
        %v295 = vmul.f32 %v294, 1.442695
        %v296 = vpow.pop %v295
        %v297 = vadd.f32 %v296, 1.0
        %v298 = vrcp.pop %v297
        %v299 = vmul.f32 %v297, %v298
        %v300 = vsub.f32 1.0, %v299
        %v301 = vmul.f32 %v298, %v300
        %v302 = vadd.f32 %v298, %v301
        %vm303 = vweird.f32 %v297
        %vm304 = vweird.f32 %v298
        %vm305 = vmor %vm303, %vm304
        %v306 = vsel %vm305, %v298, %v302
        %v307 = vand.u32 2147483647, %v297
        %vm308 = vcmp.eq.f32.partialorder %v307, 8.507059e+37
        %v309 = vand.u32 %v297, 2147483648
        %v310 = vor.u32 1.1754944e-38, %v309
        %v311 = vsel %vm308, %v310, %v306
        %v312 = vmul.f32 1.0, %v311
        %v313 = vperm.slane %v312, 0
        %v314 = vlaneseq
        %v315 = vshrl.u32 %v314, 7
        %317 = vset.pattern.permute.xlu0 %v315
        %318 = vperm.xlu0 %317, %v313
        %v319 = vpop.permute.xlu0 %318
        %v320 = vlaneseq
        %v321 = vshrl.u32 %v320, 7
        %v322 = vadd.s32 %v321, 8
        %323 = vset.pattern.permute.xlu0 %v322
        %324 = vperm.xlu0 %323, %v313
        %v325 = vpop.permute.xlu0 %324
        %v326 = vlaneseq
        %v327 = vshrl.u32 %v326, 7
        %v328 = vadd.s32 %v327, 16
        %329 = vset.pattern.permute.xlu0 %v328
        %330 = vperm.xlu0 %329, %v313
        %v331 = vpop.permute.xlu0 %330
        %v332 = vlaneseq
        %v333 = vshrl.u32 %v332, 7
        %v334 = vadd.s32 %v333, 24
        %335 = vset.pattern.permute.xlu0 %v334
        %336 = vperm.xlu0 %335, %v313
        %v337 = vpop.permute.xlu0 %336
        %v338 = vmul.f32 %v191, %v319
        %v339 = vmul.f32 %v192, %v319
        %v340 = vmul.f32 %v193, %v325
        %v341 = vmul.f32 %v194, %v325
        %v342 = vmul.f32 %v195, %v331
        %v343 = vmul.f32 %v196, %v331
        %v344 = vmul.f32 %v197, %v337
        %v345 = vmul.f32 %v198, %v337
        %346 = vst [vmem:[%s190] sm:$0xff] %v338
        %347 = vst [vmem:[%s190 + $0x8] sm:$0xff] %v339
        %348 = vst [vmem:[%s190 + $0x10] sm:$0xff] %v340
        %349 = vst [vmem:[%s190 + $0x18] sm:$0xff] %v341
        %350 = vst [vmem:[%s190 + $0x20] sm:$0xff] %v342
        %351 = vst [vmem:[%s190 + $0x28] sm:$0xff] %v343
        %352 = vst [vmem:[%s190 + $0x30] sm:$0xff] %v344
        %353 = vst [vmem:[%s190 + $0x38] sm:$0xff] %v345
        %s354 = sand.u32 %s96, 1
        %s355 = scalar_lea.sflag [#allocation4], %s354
        %s356 = sand.u32 %s96, 1
        %s357 = smul.addr %s356, 64
        %s358 = scalar_lea.vmem [#allocation5], %s357
        // Predicated region
        $region37: #{tpu_custom_call.1} parent=31 // pred_check
          %p359 = pneg %p106
        $region38: #{tpu_custom_call.1} parent=31 // pred_check_branch
          %361 = sbr.rel (%p359) target = $region40
        $region39: #{tpu_custom_call.1} parent=31 // pred_region
          %363 = vsyncadd %s355, 0
          %s364 = smul.addr %s20, 8
          %s365 = smul.addr %s364, 8
          %s366 = scalar_lea.hbm %s3, %s365
          %s367 = sshll.u32 %s358, 4
          %s368 = int_to_ptr.vmem [resolvable:$true] %s367
          %s369 = sshll.u32 %s366, 4
          %s370 = int_to_ptr.hbm [resolvable:$true] %s369
          %375 = dma.vmem_to_hbm [thread:$0]  %s368, 1024, %s370, %s355, 256, 256, 16
        $region40: #{tpu_custom_call.1} parent=31 // pred_fallthru
          _
      $region32: #{tpu_custom_call.1} parent=5 // pred_fallthru
        _
      %p376 = scmp.le.s32.totalorder 2, %s15
      // Predicated region
      $region41: #{tpu_custom_call.1} parent=5 // pred_check
        %p377 = pneg %p376
      $region42: #{tpu_custom_call.1} parent=5 // pred_check_branch
        %379 = sbr.rel (%p377) target = $region44
      $region43: #{tpu_custom_call.1} parent=5 // pred_region
        %s380 = ssub.s32 %s15, 2
        // Predicated region
        $region45: #{tpu_custom_call.1} parent=43 // pred_check
          %p381 = pneg %p112
        $region46: #{tpu_custom_call.1} parent=43 // pred_check_branch
          %383 = sbr.rel (%p381) target = $region48
        $region47: #{tpu_custom_call.1} parent=43 // pred_region
          %s384 = sand.u32 %s97, 1
          %s385 = scalar_lea.sflag [#allocation4], %s384
          %s386 = sand.u32 %s97, 1
          %s387 = smul.addr %s386, 64
          %s388 = scalar_lea.vmem [#allocation5], %s387
          %390 = dma.done %s385, 1024
        $region48: #{tpu_custom_call.1} parent=43 // pred_fallthru
          _
      $region44: #{tpu_custom_call.1} parent=5 // pred_fallthru
        _
    $region6: #{tpu_custom_call.1} parent=1 // loop_footer
      %s19 = sadd.s32 1, %s15
    $region7: #{tpu_custom_call.1} parent=1 // loop_footer_branch
      %14 = sbr.rel target = $region3
    $region8: #{tpu_custom_call.1} parent=1 // loop_exit
      _
    %391 = vsyncpa [#allocation3], 1
    %s392 = scalar_lea.sflag [#allocation3], 1
    %393 = vsyncpa %s392, 1
    %394 = vsyncpa [#allocation4], 1
    %s395 = scalar_lea.sflag [#allocation4], 1
    %396 = vsyncpa %s395, 1

</llo_original>
